<compile_context>
chip_gen: v7x
topology: tpu7x:2x2x1
jax: 0.10.0
libtpu: 0.0.40
codegen_flags: <defaults>
</compile_context>

<pallas_src>
import functools

import jax
import jax.numpy as jnp
from jax.experimental import pallas as pl
from jax.experimental.pallas import tpu as pltpu

EPS = 1e-4  # matches the module's default eps=0.0001


def _round_up(x, m):
    return ((x + m - 1) // m) * m


def _pick_tile(dim_padded, pref):
    """Largest multiple of 128 that divides dim_padded and is <= pref."""
    best = 128
    for cand in range(128, min(pref, dim_padded) + 1, 128):
        if dim_padded % cand == 0:
            best = cand
    return best


def _linear_bn_relu_kernel(x_ref, w_ref, o_ref, acc_ref, *, eps, compute_dtype):
    k = pl.program_id(1)

    @pl.when(k == 0)
    def _():
        acc_ref[...] = jnp.zeros_like(acc_ref)

    x = x_ref[...]
    w = w_ref[...]
    if compute_dtype is not None:
        x = x.astype(compute_dtype)
        w = w.astype(compute_dtype)

    # x: (B, tk), w: (tn, tk)  ->  contract last dims (trans-B matmul on MXU).
    acc_ref[...] += jax.lax.dot_general(
        x, w,
        dimension_numbers=(((1,), (1,)), ((), ())),
        preferred_element_type=jnp.float32,
    )

    @pl.when(k == pl.num_programs(1) - 1)
    def _():
        z = acc_ref[...]                                   # (B, tn) f32
        # BatchNorm1d, training-mode batch stats, affine=False, biased var.
        mean = jnp.mean(z, axis=0, keepdims=True)          # sublane reduction
        centered = z - mean
        var = jnp.mean(centered * centered, axis=0, keepdims=True)
        inv_std = jax.lax.rsqrt(var + eps)                 # EUP
        # ReLU + lane-dense store.
        o_ref[...] = jnp.maximum(centered * inv_std, 0.0).astype(o_ref.dtype)


def linear_bn_relu(x, weight, *, eps=EPS, compute_dtype=None,
                   tn_pref=512, tk_pref=512):
    """
    x:      (B, in_features)            float32
    weight: (out_features, in_features) float32  (PyTorch nn.Linear layout)
    returns (B, out_features)           float32
    """
    B, K = x.shape
    N, K2 = weight.shape
    assert K == K2, "weight / input feature mismatch"

    # ---- Lane-dense output: pad N up to a multiple of 128. ----------------
    N_pad = _round_up(N, 128)
    tn = _pick_tile(N_pad, tn_pref)

    # ---- K tiling: full K if it fits in one tile, else multiples of 128. --
    if K <= tk_pref:
        K_pad, tk = K, K
    else:
        K_pad = _round_up(K, 128)
        tk = _pick_tile(K_pad, tk_pref)

    if K_pad != K:
        x = jnp.pad(x, ((0, 0), (0, K_pad - K)))
        weight = jnp.pad(weight, ((0, 0), (0, K_pad - K)))
    if N_pad != N:
        # Zero weight rows -> z == 0 for padded features -> BN+ReLU output 0,
        # sliced off below.  Keeps every in-kernel store lane-dense.
        weight = jnp.pad(weight, ((0, N_pad - N), (0, 0)))

    grid = (N_pad // tn, K_pad // tk)

    # VMEM budget: double-buffered x/w/out blocks + f32 accumulator.
    tile_bytes = 4 * (2 * B * tk + 2 * tn * tk + 2 * B * tn + B * tn)
    vmem_limit = min(max(int(tile_bytes * 1.5) + (1 << 20), 4 << 20), 64 << 20)

    cost = pl.CostEstimate(
        flops=2 * B * K_pad * N_pad,
        transcendentals=N_pad,
        bytes_accessed=4 * (B * K_pad + N_pad * K_pad + B * N_pad),
    )

    kernel = functools.partial(
        _linear_bn_relu_kernel, eps=eps, compute_dtype=compute_dtype)

    out_pad = pl.pallas_call(
        kernel,
        out_shape=jax.ShapeDtypeStruct((B, N_pad), jnp.float32),
        grid_spec=pltpu.PrefetchScalarGridSpec(
            num_scalar_prefetch=0,
            grid=grid,
            in_specs=[
                pl.BlockSpec((B, tk), lambda n, k: (0, k)),   # x
                pl.BlockSpec((tn, tk), lambda n, k: (n, k)),  # weight (N, K)
            ],
            out_specs=pl.BlockSpec((B, tn), lambda n, k: (0, n)),
            scratch_shapes=[pltpu.VMEM((B, tn), jnp.float32)],
        ),
        compiler_params=pltpu.CompilerParams(
            dimension_semantics=("parallel", "arbitrary"),
            vmem_limit_bytes=vmem_limit,
        ),
        cost_estimate=cost,
    )(x, weight)

    return out_pad[:, :N] if N_pad != N else out_pad


def reference(x, weight, eps=EPS):
    z = x @ weight.T
    mean = jnp.mean(z, axis=0, keepdims=True)
    var = jnp.mean((z - mean) ** 2, axis=0, keepdims=True)
    y = (z - mean) / jnp.sqrt(var + eps)
    return jnp.maximum(y, 0.0)


if __name__ == "__main__":
    key = jax.random.PRNGKey(0)
    k_x, k_w = jax.random.split(key)

    batch = 8
    in_features = 32
    out_features = 64

    x = jax.random.normal(k_x, (batch, in_features), dtype=jnp.float32)
    bound = 1.0 / (in_features ** 0.5)
    weight = jax.random.uniform(
        k_w, (out_features, in_features), dtype=jnp.float32,
        minval=-bound, maxval=bound,
    )

    out = linear_bn_relu(x, weight)
    out = jax.block_until_ready(out)

    ref = reference(x, weight)
    assert out.shape == (batch, out_features)
    assert jnp.allclose(out, ref, atol=1e-4, rtol=1e-4), "mismatch vs reference"

    # TODO(synk): BatchNorm running_mean/running_var tracking (used only in
    # eval mode) is not implemented; this is the training-mode forward pass.

    print("KERNEL_OK")
</pallas_src>

<mosaic_0001>
module attributes {stable_mosaic.version = 11 : i64} {
  func.func @_linear_bn_relu_kernel(%arg0: i32, %arg1: i32, %arg2: memref<8x32xf32, #tpu.memory_space<vmem>>, %arg3: memref<128x32xf32, #tpu.memory_space<vmem>>, %arg4: memref<8x128xf32, #tpu.memory_space<vmem>>, %arg5: memref<8x128xf32, #tpu.memory_space<vmem>>) attributes {dimension_semantics = [#tpu.dimension_semantics<parallel>, #tpu.dimension_semantics<arbitrary>], iteration_bounds = array<i64: 1, 1>, scalar_prefetch = 0 : i64, scratch_operands = 1 : i64, tpu.core_type = #tpu.core_type<tc>, window_params = [{transform_indices = @transform_0, window_bounds = array<i64: 8, 32>}, {transform_indices = @transform_1, window_bounds = array<i64: 128, 32>}, {transform_indices = @transform_2, window_bounds = array<i64: 8, 128>}]} {
    %c0_i32 = arith.constant 0 : i32
    %0 = arith.cmpi eq, %arg1, %c0_i32 : i32
    %1 = arith.extui %0 : i1 to i32
    %c0_i32_0 = arith.constant 0 : i32
    %2 = arith.cmpi ne, %1, %c0_i32_0 : i32
    scf.if %2 {
      %cst_10 = arith.constant 0.000000e+00 : f32
      %12 = vector.broadcast %cst_10 : f32 to vector<8x128xf32>
      %c0_11 = arith.constant 0 : index
      %c0_12 = arith.constant 0 : index
      %13 = vector.load %arg5[%c0_11, %c0_12] : memref<8x128xf32, #tpu.memory_space<vmem>>, vector<8x128xf32>
      tpu.vector_store %arg5[%c0_11, %c0_12], %12 {strides = array<i32>} : memref<8x128xf32, #tpu.memory_space<vmem>>, vector<8x128xf32>,
    } else {
    }
    %c0 = arith.constant 0 : index
    %c0_1 = arith.constant 0 : index
    %3 = vector.load %arg2[%c0, %c0_1] : memref<8x32xf32, #tpu.memory_space<vmem>>, vector<8x32xf32>
    %c0_2 = arith.constant 0 : index
    %c0_3 = arith.constant 0 : index
    %4 = vector.load %arg3[%c0_2, %c0_3] : memref<128x32xf32, #tpu.memory_space<vmem>>, vector<128x32xf32>
    %c0_4 = arith.constant 0 : index
    %c0_5 = arith.constant 0 : index
    %5 = vector.load %arg5[%c0_4, %c0_5] : memref<8x128xf32, #tpu.memory_space<vmem>>, vector<8x128xf32>
    %cst = arith.constant dense<0.000000e+00> : vector<8x128xf32>
    %6 = tpu.matmul %3, %4, %cst {dimension_numbers = #tpu.dot_dimension_numbers<[1], [1], [0], [0], [0, 0, 1, 0], [], []>} : vector<8x32xf32>, vector<128x32xf32>, vector<8x128xf32> -> vector<8x128xf32>
    %7 = arith.addf %5, %6 : vector<8x128xf32>
    %c0_6 = arith.constant 0 : index
    %c0_7 = arith.constant 0 : index
    %8 = vector.load %arg5[%c0_6, %c0_7] : memref<8x128xf32, #tpu.memory_space<vmem>>, vector<8x128xf32>
    tpu.vector_store %arg5[%c0_6, %c0_7], %7 {strides = array<i32>} : memref<8x128xf32, #tpu.memory_space<vmem>>, vector<8x128xf32>,
    %c0_i32_8 = arith.constant 0 : i32
    %9 = arith.cmpi eq, %arg1, %c0_i32_8 : i32
    %10 = arith.extui %9 : i1 to i32
    %c0_i32_9 = arith.constant 0 : i32
    %11 = arith.cmpi ne, %10, %c0_i32_9 : i32
    scf.if %11 {
      %c0_10 = arith.constant 0 : index
      %c0_11 = arith.constant 0 : index
      %12 = vector.load %arg5[%c0_10, %c0_11] : memref<8x128xf32, #tpu.memory_space<vmem>>, vector<8x128xf32>
      %cst_12 = arith.constant dense<0.000000e+00> : vector<128xf32>
      %13 = vector.multi_reduction <add>, %12, %cst_12 [0] : vector<8x128xf32> to vector<128xf32>
      %14 = vector.shape_cast %13 : vector<128xf32> to vector<1x128xf32>
      %cst_13 = arith.constant 8.000000e+00 : f32
      %15 = vector.broadcast %cst_13 : f32 to vector<1x128xf32>
      %16 = arith.divf %14, %15 : vector<1x128xf32>
      %17 = vector.broadcast %16 : vector<1x128xf32> to vector<8x128xf32>
      %18 = arith.subf %12, %17 : vector<8x128xf32>
      %19 = arith.mulf %18, %18 : vector<8x128xf32>
      %cst_14 = arith.constant dense<0.000000e+00> : vector<128xf32>
      %20 = vector.multi_reduction <add>, %19, %cst_14 [0] : vector<8x128xf32> to vector<128xf32>
      %21 = vector.shape_cast %20 : vector<128xf32> to vector<1x128xf32>
      %cst_15 = arith.constant 8.000000e+00 : f32
      %22 = vector.broadcast %cst_15 : f32 to vector<1x128xf32>
      %23 = arith.divf %21, %22 : vector<1x128xf32>
      %cst_16 = arith.constant 9.99999974E-5 : f32
      %24 = vector.broadcast %cst_16 : f32 to vector<1x128xf32>
      %25 = arith.addf %23, %24 : vector<1x128xf32>
      %26 = math.rsqrt %25 : vector<1x128xf32>
      %27 = vector.broadcast %26 : vector<1x128xf32> to vector<8x128xf32>
      %28 = arith.mulf %18, %27 : vector<8x128xf32>
      %cst_17 = arith.constant 0.000000e+00 : f32
      %29 = vector.broadcast %cst_17 : f32 to vector<8x128xf32>
      %30 = arith.maximumf %28, %29 : vector<8x128xf32>
      %c0_18 = arith.constant 0 : index
      %c0_19 = arith.constant 0 : index
      %31 = vector.load %arg4[%c0_18, %c0_19] : memref<8x128xf32, #tpu.memory_space<vmem>>, vector<8x128xf32>
      tpu.vector_store %arg4[%c0_18, %c0_19], %30 {strides = array<i32>} : memref<8x128xf32, #tpu.memory_space<vmem>>, vector<8x128xf32>,
    } else {
    }
    return
  }
  func.func @transform_0(%arg0: i32, %arg1: i32) -> (i32, i32) {
    %c0_i32 = arith.constant 0 : i32
    %c0_i32_0 = arith.constant 0 : i32
    return %c0_i32, %arg1 : i32, i32
  }
  func.func @transform_1(%arg0: i32, %arg1: i32) -> (i32, i32) {
    %c0_i32 = arith.constant 0 : i32
    return %arg0, %arg1 : i32, i32
  }
  func.func @transform_2(%arg0: i32, %arg1: i32) -> (i32, i32) {
    %c0_i32 = arith.constant 0 : i32
    %c0_i32_0 = arith.constant 0 : i32
    return %c0_i32, %arg0 : i32, i32
  }
}

</mosaic_0001>

<llo_original>
// kernel: tpu_custom_call.1
$region0: #{tpu_custom_call.1}
  #allocation0 [shape = 'u32[]', space=smem, size = 0x4, offset = 0x4, fixed_abs, tag = 'smem constant byte address 0x4 - core index']
  #allocation1 [shape = 'u32[144,128]{1,0:T(1,128)}', space=vmem, size = 0x12000, scoped, tag = 'internal scratch']
  #allocation2 [shape = 'f32[8,128]{1,0:T(8,128)}', space=vmem, size = 0x1000, scoped, tag = 'scratch operand']
  %s0 = inlined_call_operand.vmem [shape: f32[8,32], index: 0, kind: input, shape index: {}]
  %s1 = inlined_call_operand.vmem [shape: f32[128,32], index: 1, kind: input, shape index: {}]
  %s2 = inlined_call_operand.hbm [shape: f32[8,128], index: 2, kind: output, shape index: {}]
  %s3 = sld [smem:[#allocation0]]
  $region26: #{tpu_custom_call.1} parent=0
    _
  %s5 = ssub.s32 1, %s3
  %s6 = scalar_select 0, %s5, %s3
  $region1: #{tpu_custom_call.1} parent=0
    #allocation3 [shape = 'u8[4096]{0}', space=vmem, size = 0x1000, scoped, tag = 'output window, operand 0, single buffered']
    #allocation4 [shape = 's32[1]{0}', space=sflag, size = 0x4, scoped, tag = 'scoped memory for tpu_custom_call.1']
    %7 = vsyncpa [#allocation4], 0
    // Predicated region
    $region2: #{tpu_custom_call.1} parent=1 // pred_check
      _
    $region3: #{tpu_custom_call.1} parent=1 // pred_check_branch
      %9 = sbr.rel (0) target = $region5
    $region4: #{tpu_custom_call.1} parent=1 // pred_region
      _
    $region5: #{tpu_custom_call.1} parent=1 // pred_fallthru
      _
    // Predicated region
    $region6: #{tpu_custom_call.1} parent=1 // pred_check
      _
    $region7: #{tpu_custom_call.1} parent=1 // pred_check_branch
      %11 = sbr.rel (0) target = $region9
    $region8: #{tpu_custom_call.1} parent=1 // pred_region
      _
    $region9: #{tpu_custom_call.1} parent=1 // pred_fallthru
      _
    %p12 = scmp.eq.s32.totalorder 0, 0
    // Predicated region
    $region10: #{tpu_custom_call.1} parent=1 // pred_check
      %p13 = pneg %p12
    $region11: #{tpu_custom_call.1} parent=1 // pred_check_branch
      %15 = sbr.rel (%p13) target = $region13
    $region12: #{tpu_custom_call.1} parent=1 // pred_region
      %16 = vst [vmem:[#allocation2] sm:$0xff] 0.0
    $region13: #{tpu_custom_call.1} parent=1 // pred_fallthru
      _
    %v17 = vld [vmem:[%s0] sm:$0xff]
    %v18 = vld [vmem:[%s1] sm:$0xff]
    %v19 = vld [vmem:[%s1 + $0x8] sm:$0xff]
    %v20 = vld [vmem:[%s1 + $0x10] sm:$0xff]
    %v21 = vld [vmem:[%s1 + $0x18] sm:$0xff]
    %v22 = vld [vmem:[%s1 + $0x20] sm:$0xff]
    %v23 = vld [vmem:[%s1 + $0x28] sm:$0xff]
    %v24 = vld [vmem:[%s1 + $0x30] sm:$0xff]
    %v25 = vld [vmem:[%s1 + $0x38] sm:$0xff]
    %v26 = vld [vmem:[%s1 + $0x40] sm:$0xff]
    %v27 = vld [vmem:[%s1 + $0x48] sm:$0xff]
    %v28 = vld [vmem:[%s1 + $0x50] sm:$0xff]
    %v29 = vld [vmem:[%s1 + $0x58] sm:$0xff]
    %v30 = vld [vmem:[%s1 + $0x60] sm:$0xff]
    %v31 = vld [vmem:[%s1 + $0x68] sm:$0xff]
    %v32 = vld [vmem:[%s1 + $0x70] sm:$0xff]
    %v33 = vld [vmem:[%s1 + $0x78] sm:$0xff]
    %v34 = vld [vmem:[#allocation2] sm:$0xff]
    %vm35 = vcmask 261120
    %v37 = vsel %vm35, %v17, 0
    %v40 = vsel %vm35, %v18, 0
    %v43 = vsel %vm35, %v19, 0
    %v46 = vsel %vm35, %v20, 0
    %v49 = vsel %vm35, %v21, 0
    %v52 = vsel %vm35, %v22, 0
    %v55 = vsel %vm35, %v23, 0
    %v58 = vsel %vm35, %v24, 0
    %v61 = vsel %vm35, %v25, 0
    %v64 = vsel %vm35, %v26, 0
    %v67 = vsel %vm35, %v27, 0
    %v70 = vsel %vm35, %v28, 0
    %v73 = vsel %vm35, %v29, 0
    %v76 = vsel %vm35, %v30, 0
    %v79 = vsel %vm35, %v31, 0
    %v82 = vsel %vm35, %v32, 0
    %v85 = vsel %vm35, %v33, 0
    %87 = vmatprep.subr.mxu0 0.0
    %88 = vmatpush1.xpose.msra.mxu0 %v40
    %89 = vmatprep.subr.mxu0 0.0
    %90 = vmatpush1.xpose.msra.mxu0 %v43
    %91 = vmatprep.subr.mxu0 0.0
    %92 = vmatpush1.xpose.msra.mxu0 %v46
    %93 = vmatprep.subr.mxu0 0.0
    %94 = vmatpush1.xpose.msra.mxu0 %v49
    %95 = vmatprep.subr.mxu0 0.0
    %96 = vmatpush1.xpose.msra.mxu0 %v52
    %97 = vmatprep.subr.mxu0 0.0
    %98 = vmatpush1.xpose.msra.mxu0 %v55
    %99 = vmatprep.subr.mxu0 0.0
    %100 = vmatpush1.xpose.msra.mxu0 %v58
    %101 = vmatprep.subr.mxu0 0.0
    %102 = vmatpush1.xpose.msra.mxu0 %v61
    %103 = vmatprep.subr.mxu0 0.0
    %104 = vmatpush1.xpose.msra.mxu0 %v64
    %105 = vmatprep.subr.mxu0 0.0
    %106 = vmatpush1.xpose.msra.mxu0 %v67
    %107 = vmatprep.subr.mxu0 0.0
    %108 = vmatpush1.xpose.msra.mxu0 %v70
    %109 = vmatprep.subr.mxu0 0.0
    %110 = vmatpush1.xpose.msra.mxu0 %v73
    %111 = vmatprep.subr.mxu0 0.0
    %112 = vmatpush1.xpose.msra.mxu0 %v76
    %113 = vmatprep.subr.mxu0 0.0
    %114 = vmatpush1.xpose.msra.mxu0 %v79
    %115 = vmatprep.subr.mxu0 0.0
    %116 = vmatpush1.xpose.msra.mxu0 %v82
    %117 = vmatprep.subr.mxu0 0.0
    %118 = vmatpush1.xpose.msra.mxu0 %v85
    %119 = vmatprep.subr.mxu0 0.0
    %120 = vmatpush1.xpose.msra.mxu0 0.0
    %121 = vmatprep.subr.mxu0 0.0
    %122 = vmatpush1.xpose.msra.mxu0 0.0
    %123 = vmatprep.subr.mxu0 0.0
    %124 = vmatpush1.xpose.msra.mxu0 0.0
    %125 = vmatprep.subr.mxu0 0.0
    %126 = vmatpush1.xpose.msra.mxu0 0.0
    %127 = vmatprep.subr.mxu0 0.0
    %128 = vmatpush1.xpose.msra.mxu0 0.0
    %129 = vmatprep.subr.mxu0 0.0
    %130 = vmatpush1.xpose.msra.mxu0 0.0
    %131 = vmatprep.subr.mxu0 0.0
    %132 = vmatpush1.xpose.msra.mxu0 0.0
    %133 = vmatprep.subr.mxu0 0.0
    %134 = vmatpush1.xpose.msra.mxu0 0.0
    %135 = vmatprep.subr.mxu0 0.0
    %136 = vmatpush1.xpose.msra.mxu0 0.0
    %137 = vmatprep.subr.mxu0 0.0
    %138 = vmatpush1.xpose.msra.mxu0 0.0
    %139 = vmatprep.subr.mxu0 0.0
    %140 = vmatpush1.xpose.msra.mxu0 0.0
    %141 = vmatprep.subr.mxu0 0.0
    %142 = vmatpush1.xpose.msra.mxu0 0.0
    %143 = vmatprep.subr.mxu0 0.0
    %144 = vmatpush1.xpose.msra.mxu0 0.0
    %145 = vmatprep.subr.mxu0 0.0
    %146 = vmatpush1.xpose.msra.mxu0 0.0
    %147 = vmatprep.subr.mxu0 0.0
    %148 = vmatpush1.xpose.msra.mxu0 0.0
    %149 = vmatprep.subr.mxu0 0.0
    %150 = vmatpush1.xpose.msra.mxu0 0.0
    %151 = vmatprep.mubr.f32.mxu0 0.0
    %152 = vmatmul.mubr.f32.gmra.mrb[0].mxu0 %v37
    %v153 = vpop.f32.mrb[0].mxu0
    %v154 = vadd.f32 0.0, %v153
    %v155 = vpop.f32.mrb[0].mxu0
    %156 = vdwg.mxu0
    %v157 = vadd.f32 %v34, %v154
    %158 = vst [vmem:[#allocation2] sm:$0xff] %v157
    // Predicated region
    $region14: #{tpu_custom_call.1} parent=1 // pred_check
      %p159 = pneg %p12
    $region15: #{tpu_custom_call.1} parent=1 // pred_check_branch
      %161 = sbr.rel (%p159) target = $region17
    $region16: #{tpu_custom_call.1} parent=1 // pred_region
      %v162 = vld [vmem:[#allocation2] sm:$0xff]
      %v163 = vrot.slane %v162, 4
      %v164 = vadd.f32 %v162, %v163
      %v165 = vrot.slane %v164, 2
      %v166 = vadd.f32 %v164, %v165
      %v167 = vrot.slane %v166, 1
      %v168 = vadd.f32 %v166, %v167
      %v169 = vrcp.pop 8.0
      %v170 = vmul.f32 %v168, %v169
      %v171 = vsub.f32 %v162, %v170
      %v172 = vmul.f32 %v171, %v171
      %v173 = vrot.slane %v172, 4
      %v174 = vadd.f32 %v172, %v173
      %v175 = vrot.slane %v174, 2
      %v176 = vadd.f32 %v174, %v175
      %v177 = vrot.slane %v176, 1
      %v178 = vadd.f32 %v176, %v177
      %v179 = vmul.f32 %v178, %v169
      %v180 = vadd.f32 %v179, 0.0001
      %v181 = vrsqrt.pop %v180
      %v182 = vmul.f32 %v171, %v181
      %v183 = vmax.f32 %v182, 0.0
      %184 = vst [vmem:[#allocation3] sm:$0xff] %v183
    $region17: #{tpu_custom_call.1} parent=1 // pred_fallthru
      _
    // Predicated region
    $region18: #{tpu_custom_call.1} parent=1 // pred_check
      _
    $region19: #{tpu_custom_call.1} parent=1 // pred_check_branch
      %186 = sbr.rel (0) target = $region21
    $region20: #{tpu_custom_call.1} parent=1 // pred_region
      %s188 = ssub.s32 128, 128
      %189 = vsyncadd [#allocation4], %s188
      %s191 = sshll.u32 [#allocation3], 4
      %s192 = int_to_ptr.vmem [resolvable:$true] %s191
      %194 = dma.vmem_to_hbm [thread:$0]  %s192, 128, %s2, [#allocation4]
    $region21: #{tpu_custom_call.1} parent=1 // pred_fallthru
      _
    // Predicated region
    $region22: #{tpu_custom_call.1} parent=1 // pred_check
      _
    $region23: #{tpu_custom_call.1} parent=1 // pred_check_branch
      %196 = sbr.rel (0) target = $region25
    $region24: #{tpu_custom_call.1} parent=1 // pred_region
      %197 = dma.done [#allocation4], 128
    $region25: #{tpu_custom_call.1} parent=1 // pred_fallthru
      _
    %198 = vsyncpa [#allocation4], 1

</llo_original>
